<compile_context>
chip_gen: v6e
topology: v6e:2x2x1
jax: 0.10.0
libtpu: 0.0.40
codegen_flags: <defaults>
</compile_context>

<pallas_src>
import jax
import jax.numpy as jnp
from jax.experimental import pallas as pl
from jax.experimental.pallas import tpu as pltpu

_LANES = 128
_SUBLANES = 8


def _flatten_to_slab(x):
    """Row-major flatten + reshape to (rows, 128) in the ORIGINAL dtype.

    Pads (one minimal native-dtype copy) only when numel is not a multiple of
    128; for lane-aligned inputs this is a free reshape (no HBM traffic).
    Padded elements are zeros and contribute exactly 0 to every sum.
    """
    n = int(x.size)
    flat = jnp.ravel(x)
    rows = -(-n // _LANES)
    padded = rows * _LANES
    if padded != n:
        flat = jnp.pad(flat, (0, padded - n))
    return flat.reshape(rows, _LANES)


def _num_tensorcores() -> int:
    """Best-effort TensorCores-per-chip (megacore split).  v5e/v6e = 1."""
    try:
        kind = jax.devices()[0].device_kind.lower()
    except Exception:
        return 1
    if "v7" in kind or "v4" in kind:
        return 2
    return 1


def _make_mape_kernel(*, weighted, eps, tile_rows, nb, bpc, tail_rows,
                      approx_reciprocal):
    """Builds the grid-step kernel with all geometry baked in as Python ints."""
    blk8 = tile_rows // _SUBLANES

    def _ape(pred_ref, targ_ref):
        p = pred_ref[...].astype(jnp.float32)
        t = targ_ref[...].astype(jnp.float32)
        denom = jnp.abs(t) + jnp.float32(eps)
        numer = jnp.abs(t - p)
        if approx_reciprocal:
            # EUP vrcp: moves work off the VPU slot (decisive when VPU-bound).
            return numer * pl.reciprocal(denom, approx=True)
        return numer / denom

    def _fold(x):
        # (tile_rows, 128) -> (8, 128) with pure VPU adds (leading-dim view;
        # no cross-sublane XLU work inside the kernel).
        return x.reshape(blk8, _SUBLANES, _LANES).sum(axis=0)

    if not weighted:
        def kernel(pred_ref, targ_ref, acc_ref):
            c = pl.program_id(0)
            i = pl.program_id(1)
            block = c * bpc + i

            @pl.when(i == 0)
            def _():
                acc_ref[...] = jnp.zeros_like(acc_ref)

            def accumulate(mask_tail):
                ape = _ape(pred_ref, targ_ref)
                if mask_tail:
                    rid = jax.lax.broadcasted_iota(jnp.int32, ape.shape, 0)
                    ape = jnp.where(rid < tail_rows, ape, 0.0)
                acc_ref[...] += _fold(ape)

            if tail_rows == tile_rows:
                @pl.when(block < nb)            # only skip phantom blocks
                def _():
                    accumulate(False)
            else:
                @pl.when(block < nb - 1)        # interior: unmasked fast path
                def _():
                    accumulate(False)

                @pl.when(block == nb - 1)       # tail: masked
                def _():
                    accumulate(True)

        return kernel

    def kernel(pred_ref, targ_ref, w_ref, num_ref, den_ref):
        c = pl.program_id(0)
        i = pl.program_id(1)
        block = c * bpc + i

        @pl.when(i == 0)
        def _():
            num_ref[...] = jnp.zeros_like(num_ref)
            den_ref[...] = jnp.zeros_like(den_ref)

        def accumulate(mask_tail):
            ape = _ape(pred_ref, targ_ref)
            w = w_ref[...].astype(jnp.float32)
            aw = ape * w
            if mask_tail:
                rid = jax.lax.broadcasted_iota(jnp.int32, w.shape, 0)
                mask = rid < tail_rows
                aw = jnp.where(mask, aw, 0.0)   # garbage OOB rows never reach
                w = jnp.where(mask, w, 0.0)     # the accumulators
            num_ref[...] += _fold(aw)
            den_ref[...] += _fold(w)

        if tail_rows == tile_rows:
            @pl.when(block < nb)
            def _():
                accumulate(False)
        else:
            @pl.when(block < nb - 1)
            def _():
                accumulate(False)

            @pl.when(block == nb - 1)
            def _():
                accumulate(True)

    return kernel


def mape(pred, target, weight=None, eps: float = 1e-8,
         tile_rows: int = 8192, approx_reciprocal: bool = False):
    assert pred.shape == target.shape
    n = int(pred.size)

    # Slab geometry: lane-granular rows (padded tail lanes are zeros).
    rows = -(-n // _LANES)

    # Tile height: multiple of 8, clamped for small inputs.
    tile_rows = max(_SUBLANES, (int(tile_rows) // _SUBLANES) * _SUBLANES)
    rows8 = -(-rows // _SUBLANES) * _SUBLANES
    tile_rows_eff = min(tile_rows, rows8)

    nb = pl.cdiv(rows, tile_rows_eff)                 # real row-blocks
    tail_rows = rows - (nb - 1) * tile_rows_eff       # valid rows, last block

    nc = _num_tensorcores() if nb >= 2 else 1         # 2 only on 2-TC chips
    bpc = pl.cdiv(nb, nc)
    grid = (nc, bpc)

    def in_map(c, i):
        # Clamp phantom blocks onto the last real block; their compute is
        # skipped in-kernel via pl.when.
        return (jnp.minimum(c * bpc + i, nb - 1), 0)

    # TODO(synk): on v7x, verify the 2-way "parallel" axis actually shards
    # across both TensorCores (else switch to pltpu.CORE_PARALLEL / core_map).
    tile_spec = pl.BlockSpec((tile_rows_eff, _LANES), in_map)
    acc_spec = pl.BlockSpec((_SUBLANES, _LANES), lambda c, i: (c, 0))

    pred_s = _flatten_to_slab(pred)
    targ_s = _flatten_to_slab(target)
    inputs = [pred_s, targ_s]
    weighted = weight is not None
    if weighted:
        assert weight.shape == pred.shape
        inputs.append(_flatten_to_slab(weight))

    # Double-buffered input footprint -> explicit scoped-VMEM budget (large
    # tiles are then safe on v5e's 16 MiB default, well within v7x's 64 MiB).
    itemsize = max(x.dtype.itemsize for x in inputs)
    need = len(inputs) * 2 * tile_rows_eff * _LANES * itemsize + (2 << 20)
    vmem_limit = int(min(max(need + (need >> 2), 32 << 20), 56 << 20))

    compiler_params = pltpu.CompilerParams(
        dimension_semantics=("parallel", "arbitrary"),
        vmem_limit_bytes=vmem_limit)

    cost = pl.CostEstimate(
        flops=(7 if weighted else 5) * n,
        transcendentals=0,
        bytes_accessed=sum(int(x.size) * x.dtype.itemsize for x in inputs))

    kernel = _make_mape_kernel(
        weighted=weighted, eps=eps, tile_rows=tile_rows_eff, nb=nb, bpc=bpc,
        tail_rows=tail_rows, approx_reciprocal=approx_reciprocal)

    if not weighted:
        partials = pl.pallas_call(
            kernel,
            out_shape=jax.ShapeDtypeStruct((nc * _SUBLANES, _LANES),
                                           jnp.float32),
            grid_spec=pltpu.PrefetchScalarGridSpec(
                num_scalar_prefetch=0,
                grid=grid,
                in_specs=[tile_spec, tile_spec],
                out_specs=acc_spec,
            ),
            compiler_params=compiler_params,
            cost_estimate=cost,
        )(*inputs)
        return jnp.float32(100.0) * jnp.sum(partials) / jnp.float32(n)

    num, den = pl.pallas_call(
        kernel,
        out_shape=(jax.ShapeDtypeStruct((nc * _SUBLANES, _LANES), jnp.float32),
                   jax.ShapeDtypeStruct((nc * _SUBLANES, _LANES), jnp.float32)),
        grid_spec=pltpu.PrefetchScalarGridSpec(
            num_scalar_prefetch=0,
            grid=grid,
            in_specs=[tile_spec, tile_spec, tile_spec],
            out_specs=[acc_spec, acc_spec],
        ),
        compiler_params=compiler_params,
        cost_estimate=cost,
    )(*inputs)
    # NOTE: matches torch — no guard against sum(weight) == 0 (NaN there).
    return jnp.sum(num) / jnp.sum(den)


if __name__ == "__main__":
    eps = 1e-8
    key = jax.random.PRNGKey(0)
    k1, k2, k3 = jax.random.split(key, 3)

    # --- test 1: small NCHW output, lane-aligned (zero-copy slab path) ---
    shape = (2, 4, 16, 16)
    pred = jax.random.normal(k1, shape, dtype=jnp.float32)
    target = jax.random.normal(k2, shape, dtype=jnp.float32) + 1.0
    weight = jax.random.uniform(k3, shape, dtype=jnp.float32) + 0.1

    loss = mape(pred, target)
    wloss = mape(pred, target, weight=weight)
    jax.block_until_ready((loss, wloss))

    ape = jnp.abs(target - pred) / (jnp.abs(target) + eps)
    ref = 100.0 * jnp.mean(ape)
    wref = jnp.sum(ape * weight / jnp.sum(weight))
    assert jnp.allclose(loss, ref, rtol=1e-5, atol=1e-5), (loss, ref)
    assert jnp.allclose(wloss, wref, rtol=1e-5, atol=1e-5), (wloss, wref)

    # --- test 2: awkward shape — exercises lane-tail padding, partial last
    # block masking, phantom-block skipping and the (optional) 2-way split.
    k4, k5, k6 = jax.random.split(jax.random.PRNGKey(1), 3)
    shape2 = (3, 7, 37, 41)
    pred2 = jax.random.normal(k4, shape2, dtype=jnp.float32)
    target2 = jax.random.normal(k5, shape2, dtype=jnp.float32) + 2.0
    weight2 = jax.random.uniform(k6, shape2, dtype=jnp.float32) + 0.1

    loss2 = mape(pred2, target2, tile_rows=56)
    wloss2 = mape(pred2, target2, weight=weight2, tile_rows=56)
    jax.block_until_ready((loss2, wloss2))

    ape2 = jnp.abs(target2 - pred2) / (jnp.abs(target2) + eps)
    ref2 = 100.0 * jnp.mean(ape2)
    wref2 = jnp.sum(ape2 * weight2 / jnp.sum(weight2))
    assert jnp.allclose(loss2, ref2, rtol=1e-4, atol=1e-5), (loss2, ref2)
    assert jnp.allclose(wloss2, wref2, rtol=1e-4, atol=1e-5), (wloss2, wref2)

    # --- test 3: approx-reciprocal fast path (EUP vrcp), looser tolerance ---
    loss3 = mape(pred2, target2, tile_rows=56, approx_reciprocal=True)
    jax.block_until_ready(loss3)
    assert jnp.allclose(loss3, ref2, rtol=5e-3), (loss3, ref2)

    print("KERNEL_OK")
</pallas_src>

<mosaic_0001>
module attributes {stable_mosaic.version = 11 : i64} {
  func.func @kernel(%arg0: i32, %arg1: i32, %arg2: memref<16x128xf32, #tpu.memory_space<vmem>>, %arg3: memref<16x128xf32, #tpu.memory_space<vmem>>, %arg4: memref<8x128xf32, #tpu.memory_space<vmem>>) attributes {dimension_semantics = [#tpu.dimension_semantics<parallel>, #tpu.dimension_semantics<arbitrary>], iteration_bounds = array<i64: 1, 1>, scalar_prefetch = 0 : i64, scratch_operands = 0 : i64, tpu.core_type = #tpu.core_type<tc>, window_params = [{transform_indices = @transform_0, window_bounds = array<i64: 16, 128>}, {transform_indices = @transform_1, window_bounds = array<i64: 16, 128>}, {transform_indices = @transform_2, window_bounds = array<i64: 8, 128>}]} {
    %c1_i32 = arith.constant 1 : i32
    %0 = arith.muli %arg0, %c1_i32 : i32
    %1 = arith.addi %0, %arg1 : i32
    %c0_i32 = arith.constant 0 : i32
    %2 = arith.cmpi eq, %arg1, %c0_i32 : i32
    %3 = arith.extui %2 : i1 to i32
    %c0_i32_0 = arith.constant 0 : i32
    %4 = arith.cmpi ne, %3, %c0_i32_0 : i32
    scf.if %4 {
      %cst = arith.constant 0.000000e+00 : f32
      %8 = vector.broadcast %cst : f32 to vector<8x128xf32>
      %c0 = arith.constant 0 : index
      %c0_3 = arith.constant 0 : index
      %9 = vector.load %arg4[%c0, %c0_3] : memref<8x128xf32, #tpu.memory_space<vmem>>, vector<8x128xf32>
      tpu.vector_store %arg4[%c0, %c0_3], %8 {strides = array<i32>} : memref<8x128xf32, #tpu.memory_space<vmem>>, vector<8x128xf32>,
    } else {
    }
    %c1_i32_1 = arith.constant 1 : i32
    %5 = arith.cmpi slt, %1, %c1_i32_1 : i32
    %6 = arith.extui %5 : i1 to i32
    %c0_i32_2 = arith.constant 0 : i32
    %7 = arith.cmpi ne, %6, %c0_i32_2 : i32
    scf.if %7 {
      %c0 = arith.constant 0 : index
      %c0_3 = arith.constant 0 : index
      %8 = vector.load %arg2[%c0, %c0_3] : memref<16x128xf32, #tpu.memory_space<vmem>>, vector<16x128xf32>
      %c0_4 = arith.constant 0 : index
      %c0_5 = arith.constant 0 : index
      %9 = vector.load %arg3[%c0_4, %c0_5] : memref<16x128xf32, #tpu.memory_space<vmem>>, vector<16x128xf32>
      %10 = math.absf %9 : vector<16x128xf32>
      %cst = arith.constant 9.99999993E-9 : f32
      %11 = vector.broadcast %cst : f32 to vector<16x128xf32>
      %12 = arith.addf %10, %11 : vector<16x128xf32>
      %13 = arith.subf %9, %8 : vector<16x128xf32>
      %14 = math.absf %13 : vector<16x128xf32>
      %15 = arith.divf %14, %12 : vector<16x128xf32>
      %c0_6 = arith.constant 0 : index
      %c0_7 = arith.constant 0 : index
      %16 = vector.load %arg4[%c0_6, %c0_7] : memref<8x128xf32, #tpu.memory_space<vmem>>, vector<8x128xf32>
      %17 = vector.shape_cast %15 : vector<16x128xf32> to vector<2x8x128xf32>
      %cst_8 = arith.constant dense<0.000000e+00> : vector<8x128xf32>
      %18 = vector.multi_reduction <add>, %17, %cst_8 [0] : vector<2x8x128xf32> to vector<8x128xf32>
      %19 = arith.addf %16, %18 : vector<8x128xf32>
      %c0_9 = arith.constant 0 : index
      %c0_10 = arith.constant 0 : index
      %20 = vector.load %arg4[%c0_9, %c0_10] : memref<8x128xf32, #tpu.memory_space<vmem>>, vector<8x128xf32>
      tpu.vector_store %arg4[%c0_9, %c0_10], %19 {strides = array<i32>} : memref<8x128xf32, #tpu.memory_space<vmem>>, vector<8x128xf32>,
    } else {
    }
    return
  }
  func.func @transform_0(%arg0: i32, %arg1: i32) -> (i32, i32) {
    %c1_i32 = arith.constant 1 : i32
    %0 = arith.muli %arg0, %c1_i32 : i32
    %1 = arith.addi %0, %arg1 : i32
    %c0_i32 = arith.constant 0 : i32
    %2 = arith.minsi %1, %c0_i32 : i32
    %c0_i32_0 = arith.constant 0 : i32
    %c0_i32_1 = arith.constant 0 : i32
    return %2, %c0_i32_0 : i32, i32
  }
  func.func @transform_1(%arg0: i32, %arg1: i32) -> (i32, i32) {
    %c1_i32 = arith.constant 1 : i32
    %0 = arith.muli %arg0, %c1_i32 : i32
    %1 = arith.addi %0, %arg1 : i32
    %c0_i32 = arith.constant 0 : i32
    %2 = arith.minsi %1, %c0_i32 : i32
    %c0_i32_0 = arith.constant 0 : i32
    %c0_i32_1 = arith.constant 0 : i32
    return %2, %c0_i32_0 : i32, i32
  }
  func.func @transform_2(%arg0: i32, %arg1: i32) -> (i32, i32) {
    %c0_i32 = arith.constant 0 : i32
    %c0_i32_0 = arith.constant 0 : i32
    return %arg0, %c0_i32 : i32, i32
  }
}

</mosaic_0001>

<llo_original>
// kernel: tpu_custom_call.1
$region0: #{tpu_custom_call.1}
  #allocation0 [shape = 'u32[]', space=smem, size = 0x4, offset = 0x4, fixed_abs, tag = 'smem constant byte address 0x4 - core index']
  #allocation1 [shape = 'u32[144,128]{1,0:T(1,128)}', space=vmem, size = 0x12000, scoped, tag = 'internal scratch']
  %s0 = inlined_call_operand.hbm [shape: f32[16,128], index: 0, kind: input, shape index: {}]
  %s1 = inlined_call_operand.hbm [shape: f32[16,128], index: 1, kind: input, shape index: {}]
  %s2 = inlined_call_operand.hbm [shape: f32[8,128], index: 2, kind: output, shape index: {}]
  %s3 = sld [smem:[#allocation0]]
  $region34: #{tpu_custom_call.1} parent=0
    _
  %s5 = ssub.s32 1, %s3
  %s6 = scalar_select 0, %s5, %s3
  $region1: #{tpu_custom_call.1} parent=0
    #allocation2 [shape = 'u8[8192]{0}', space=vmem, size = 0x2000, scoped, tag = 'input window, operand 0, single buffered']
    #allocation3 [shape = 's32[1]{0}', space=sflag, size = 0x4, scoped, tag = 'scoped memory for tpu_custom_call.1']
    #allocation4 [shape = 's32[1]{0}', space=sflag, size = 0x4, scoped, tag = 'scoped memory for tpu_custom_call.1']
    #allocation5 [shape = 'u8[8192]{0}', space=vmem, size = 0x2000, scoped, tag = 'input window, operand 1, single buffered']
    #allocation6 [shape = 's32[1]{0}', space=sflag, size = 0x4, scoped, tag = 'scoped memory for tpu_custom_call.1']
    #allocation7 [shape = 'u8[4096]{0}', space=vmem, size = 0x1000, scoped, tag = 'output window, operand 0, single buffered']
    %7 = vsyncpa [#allocation3], 0
    %8 = vsyncpa [#allocation6], 0
    %9 = vsyncpa [#allocation4], 0
    // Predicated region
    $region2: #{tpu_custom_call.1} parent=1 // pred_check
      _
    $region3: #{tpu_custom_call.1} parent=1 // pred_check_branch
      %11 = sbr.rel (0) target = $region5
    $region4: #{tpu_custom_call.1} parent=1 // pred_region
      %s12 = sadd.s32 0, 0
      %p13 = scmp.lt.s32.totalorder %s12, 0
      %s14 = scalar_select %p13, %s12, 0
      %s15 = smul.u32 2, %s14
      %s17 = ssub.s32 256, 256
      %18 = vsyncadd [#allocation3], %s17
      %s19 = smul.addr %s15, 128
      %s20 = scalar_lea.hbm %s0, %s19
      %s21 = sshll.u32 [#allocation2], 4
      %s22 = int_to_ptr.vmem [resolvable:$true] %s21
      %27 = dma.hbm_to_vmem [thread:$0]  %s20, 256, %s22, [#allocation3], 128, 128, 8
    $region5: #{tpu_custom_call.1} parent=1 // pred_fallthru
      _
    // Predicated region
    $region6: #{tpu_custom_call.1} parent=1 // pred_check
      _
    $region7: #{tpu_custom_call.1} parent=1 // pred_check_branch
      %29 = sbr.rel (0) target = $region9
    $region8: #{tpu_custom_call.1} parent=1 // pred_region
      %s30 = sadd.s32 0, 0
      %p31 = scmp.lt.s32.totalorder %s30, 0
      %s32 = scalar_select %p31, %s30, 0
      %s33 = smul.u32 2, %s32
      %s35 = ssub.s32 256, 256
      %36 = vsyncadd [#allocation6], %s35
      %s37 = smul.addr %s33, 128
      %s38 = scalar_lea.hbm %s1, %s37
      %s39 = sshll.u32 [#allocation5], 4
      %s40 = int_to_ptr.vmem [resolvable:$true] %s39
      %45 = dma.hbm_to_vmem [thread:$0]  %s38, 256, %s40, [#allocation6], 128, 128, 8
    $region9: #{tpu_custom_call.1} parent=1 // pred_fallthru
      _
    // Predicated region
    $region10: #{tpu_custom_call.1} parent=1 // pred_check
      _
    $region11: #{tpu_custom_call.1} parent=1 // pred_check_branch
      %47 = sbr.rel (0) target = $region13
    $region12: #{tpu_custom_call.1} parent=1 // pred_region
      %48 = dma.done [#allocation3], 256
    $region13: #{tpu_custom_call.1} parent=1 // pred_fallthru
      _
    // Predicated region
    $region14: #{tpu_custom_call.1} parent=1 // pred_check
      _
    $region15: #{tpu_custom_call.1} parent=1 // pred_check_branch
      %50 = sbr.rel (0) target = $region17
    $region16: #{tpu_custom_call.1} parent=1 // pred_region
      %51 = dma.done [#allocation6], 256
    $region17: #{tpu_custom_call.1} parent=1 // pred_fallthru
      _
    %s52 = sadd.s32 0, 0
    %p53 = scmp.lt.s32.totalorder %s52, 0
    %s54 = scalar_select %p53, %s52, 0
    %s55 = smul.u32 2, %s54
    %s56 = sadd.s32 0, 0
    %p57 = scmp.lt.s32.totalorder %s56, 0
    %s58 = scalar_select %p57, %s56, 0
    %s59 = smul.u32 2, %s58
    %s60 = sadd.s32 0, 0
    %p61 = scmp.eq.s32.totalorder 0, 0
    // Predicated region
    $region18: #{tpu_custom_call.1} parent=1 // pred_check
      %p62 = pneg %p61
    $region19: #{tpu_custom_call.1} parent=1 // pred_check_branch
      %64 = sbr.rel (%p62) target = $region21
    $region20: #{tpu_custom_call.1} parent=1 // pred_region
      %65 = vst [vmem:[#allocation7] sm:$0xff] 0.0
    $region21: #{tpu_custom_call.1} parent=1 // pred_fallthru
      _
    %p66 = scmp.lt.s32.totalorder %s60, 1
    // Predicated region
    $region22: #{tpu_custom_call.1} parent=1 // pred_check
      %p67 = pneg %p66
    $region23: #{tpu_custom_call.1} parent=1 // pred_check_branch
      %69 = sbr.rel (%p67) target = $region25
    $region24: #{tpu_custom_call.1} parent=1 // pred_region
      %v70 = vld [vmem:[#allocation2] sm:$0xff]
      %v71 = vld [vmem:[#allocation2 + $0x8] sm:$0xff]
      %v72 = vld [vmem:[#allocation5] sm:$0xff]
      %v73 = vld [vmem:[#allocation5 + $0x8] sm:$0xff]
      %v74 = vand.u32 2147483647, %v72
      %v75 = vand.u32 2147483647, %v73
      %v76 = vadd.f32 %v74, 1e-08
      %v77 = vadd.f32 %v75, 1e-08
      %v78 = vsub.f32 %v72, %v70
      %v79 = vsub.f32 %v73, %v71
      %v80 = vand.u32 2147483647, %v78
      %v81 = vand.u32 2147483647, %v79
      %v82 = vrcp.pop %v76
      %v83 = vmul.f32 %v80, %v82
      %v84 = vrcp.pop %v77
      %v85 = vmul.f32 %v81, %v84
      %v86 = vld [vmem:[#allocation7] sm:$0xff]
      %v87 = vadd.f32 %v83, %v85
      %v88 = vadd.f32 %v86, %v87
      %89 = vst [vmem:[#allocation7] sm:$0xff] %v88
    $region25: #{tpu_custom_call.1} parent=1 // pred_fallthru
      _
    // Predicated region
    $region26: #{tpu_custom_call.1} parent=1 // pred_check
      _
    $region27: #{tpu_custom_call.1} parent=1 // pred_check_branch
      %91 = sbr.rel (0) target = $region29
    $region28: #{tpu_custom_call.1} parent=1 // pred_region
      %s93 = ssub.s32 128, 128
      %94 = vsyncadd [#allocation4], %s93
      %s96 = sshll.u32 [#allocation7], 4
      %s97 = int_to_ptr.vmem [resolvable:$true] %s96
      %99 = dma.vmem_to_hbm [thread:$0]  %s97, 128, %s2, [#allocation4]
    $region29: #{tpu_custom_call.1} parent=1 // pred_fallthru
      _
    // Predicated region
    $region30: #{tpu_custom_call.1} parent=1 // pred_check
      _
    $region31: #{tpu_custom_call.1} parent=1 // pred_check_branch
      %101 = sbr.rel (0) target = $region33
    $region32: #{tpu_custom_call.1} parent=1 // pred_region
      %102 = dma.done [#allocation4], 128
    $region33: #{tpu_custom_call.1} parent=1 // pred_fallthru
      _
    %103 = vsyncpa [#allocation3], 1
    %104 = vsyncpa [#allocation6], 1
    %105 = vsyncpa [#allocation4], 1

</llo_original>
